<compile_context>
chip_gen: v7x
topology: tpu7x:2x2x1
jax: 0.10.0
libtpu: 0.0.40
codegen_flags: <defaults>
</compile_context>

<pallas_src>
import functools

import jax
import jax.numpy as jnp
from jax.experimental import pallas as pl
from jax.experimental.pallas import tpu as pltpu

# Default cap on batch-tile rows; actual tile is also bounded by a VMEM budget.
TILE_B_MAX = 16384
# Bytes of VMEM earmarked for batch-proportional buffers (obs double buffer +
# transposed obs + hidden activations). Conservative vs 64 MiB/TC on v7x.
VMEM_TILE_BUDGET = 12 * 1024 * 1024


def _round_up(x, m):
    return ((x + m - 1) // m) * m


def _cdiv(a, b):
    return -(-a // b)


def _critic_kernel(obs_ref, w1t_ref, b1_ref, w2t_ref, b2_ref, w3_ref, b3_ref,
                   out_ref):
    """One batch tile of the fused 3-layer MLP, computed with batch on lanes.

    obs_ref : (tile_b, obs_dim)         w1t_ref : (h1, obs_dim)   b1_ref : (h1, 1)
    w2t_ref : (h2, h1)                  b2_ref  : (h2, 1)
    w3_ref  : (h2, 1)                   b3_ref  : (1, 1)
    out_ref : (1, tile_b)   -- lane-dense value row
    """
    x = obs_ref[...].astype(jnp.float32)                       # (tile_b, obs_dim)

    # layer 1: Linear + Tanh, transposed form -> (h1, tile_b)
    # (the feature-axis relayout of x rides the otherwise-idle XLU slot)
    h = jnp.dot(w1t_ref[...], x.T, preferred_element_type=jnp.float32) + b1_ref[...]
    h = jnp.tanh(h)

    # layer 2: Linear + Tanh -> (h2, tile_b)
    h = jnp.dot(w2t_ref[...], h, preferred_element_type=jnp.float32) + b2_ref[...]
    h = jnp.tanh(h)

    # layer 3 (value head, out_features = 1): VPU multiply + sublane reduce
    # instead of a badly packed N=1 MXU matmul.  -> (1, tile_b)
    v = jnp.sum(h * w3_ref[...], axis=0, keepdims=True) + b3_ref[...]

    out_ref[...] = v.astype(out_ref.dtype)


@functools.partial(jax.jit, static_argnames=("max_tile_b",))
def mlp_critic_forward(obs, params, *, max_tile_b=TILE_B_MAX):
    """obs: [B, obs_dim] float32. params: dict of weights/biases. Returns [B]."""
    w1, b1, w2, b2, w3, b3 = (params["w1"], params["b1"], params["w2"],
                              params["b2"], params["w3"], params["b3"])
    B, obs_dim = obs.shape
    h1_dim = w1.shape[1]
    h2_dim = w2.shape[1]

    # --- batch tiling: lane-aligned (multiple of 128), VMEM-budgeted ---------
    # f32 bytes per batch row resident in VMEM at once:
    #   double-buffered obs tile + transposed obs + two hidden activations.
    per_row_bytes = 4 * (2 * obs_dim + obs_dim + 2 * (h1_dim + h2_dim))
    tile_cap = min(int(max_tile_b), VMEM_TILE_BUDGET // per_row_bytes)
    tile_cap = max(128, (tile_cap // 128) * 128)

    n_tiles = _cdiv(B, tile_cap)
    # v7x has 2 TensorCores: give the parallel grid axis >= 2 steps when the
    # batch is big enough that halving still yields lane-aligned tiles.
    if n_tiles == 1 and B >= 256:
        n_tiles = 2
    tile_b = _round_up(_cdiv(B, n_tiles), 128)
    b_pad = n_tiles * tile_b

    if b_pad != B:
        obs_p = jnp.pad(obs, ((0, b_pad - B), (0, 0)))
    else:
        obs_p = obs

    # --- weight layout for the transposed (batch-on-lanes) compute ----------
    w1t = jnp.transpose(w1)                    # (h1, obs_dim)
    w2t = jnp.transpose(w2)                    # (h2, h1)
    b1c = jnp.reshape(b1, (h1_dim, 1))         # (h1, 1)
    b2c = jnp.reshape(b2, (h2_dim, 1))         # (h2, 1)
    w3c = jnp.reshape(w3, (h2_dim, 1))         # (h2, 1)
    b3c = jnp.reshape(b3, (1, 1))              # (1, 1)

    grid = (n_tiles,)

    in_specs = [
        # obs: tiled along batch; feature dim (full extent) on the lane axis.
        pl.BlockSpec((tile_b, obs_dim), lambda i: (i, 0)),
        # Weights / biases: full arrays, constant block index -> fetched once
        # and kept resident in VMEM across all batch tiles.
        pl.BlockSpec(w1t.shape, lambda i: (0, 0)),
        pl.BlockSpec(b1c.shape, lambda i: (0, 0)),
        pl.BlockSpec(w2t.shape, lambda i: (0, 0)),
        pl.BlockSpec(b2c.shape, lambda i: (0, 0)),
        pl.BlockSpec(w3c.shape, lambda i: (0, 0)),
        pl.BlockSpec(b3c.shape, lambda i: (0, 0)),
    ]
    # Lane-dense output: values laid out as a (1, b_pad) row, tiled (1, tile_b).
    out_spec = pl.BlockSpec((1, tile_b), lambda i: (0, i))

    weight_bytes = 4 * (w1t.size + b1c.size + w2t.size + b2c.size
                        + w3c.size + b3c.size)
    cost = pl.CostEstimate(
        flops=2 * b_pad * (obs_dim * h1_dim + h1_dim * h2_dim + h2_dim),
        transcendentals=b_pad * (h1_dim + h2_dim),
        bytes_accessed=b_pad * obs_dim * 4 + b_pad * 4 + weight_bytes,
    )

    out = pl.pallas_call(
        _critic_kernel,
        out_shape=jax.ShapeDtypeStruct((1, b_pad), jnp.float32),
        grid=grid,
        in_specs=in_specs,
        out_specs=out_spec,
        compiler_params=pltpu.CompilerParams(
            # Batch tiles are independent -> shard across both TCs on v7x.
            dimension_semantics=("parallel",),
            vmem_limit_bytes=32 * 1024 * 1024,
        ),
        cost_estimate=cost,
    )(obs_p, w1t, b1c, w2t, b2c, w3c, b3c)

    # torch.squeeze(..., -1) semantics, dropping padded rows.
    return out[0, :B]


def init_params(key, obs_dim, hidden_sizes):
    """Deterministic init mimicking nn.Linear default (uniform +/- 1/sqrt(fan_in))."""
    sizes = [obs_dim] + list(hidden_sizes) + [1]
    params = {}
    for j in range(len(sizes) - 1):
        fan_in, fan_out = sizes[j], sizes[j + 1]
        key, kw, kb = jax.random.split(key, 3)
        bound = 1.0 / jnp.sqrt(fan_in)
        # stored as [in, out] so the reference does x @ W
        params[f"w{j + 1}"] = jax.random.uniform(
            kw, (fan_in, fan_out), jnp.float32, -bound, bound)
        params[f"b{j + 1}"] = jax.random.uniform(
            kb, (1, fan_out), jnp.float32, -bound, bound)
    return params


def _reference(obs, params):
    h = jnp.tanh(obs @ params["w1"] + params["b1"])
    h = jnp.tanh(h @ params["w2"] + params["b2"])
    return jnp.squeeze(h @ params["w3"] + params["b3"], -1)


if __name__ == "__main__":
    key = jax.random.PRNGKey(0)

    obs_dim = 16
    hidden_sizes = (32, 32)   # two hidden layers with tanh activation
    params = init_params(key, obs_dim, hidden_sizes)

    # Case 1: small demo batch (single tile, padded to one lane-aligned tile).
    key, k_obs = jax.random.split(key)
    obs = jax.random.normal(k_obs, (8, obs_dim), jnp.float32)
    v = jax.block_until_ready(mlp_critic_forward(obs, params))
    ref = _reference(obs, params)
    assert v.shape == (8,), v.shape
    assert jnp.allclose(v, ref, atol=1e-4, rtol=1e-4)

    # Case 2: ragged batch forced through multiple grid tiles (exercises the
    # batch-tiled pipeline + padding/slicing path).
    key, k_obs2 = jax.random.split(key)
    obs2 = jax.random.normal(k_obs2, (300, obs_dim), jnp.float32)
    v2 = jax.block_until_ready(mlp_critic_forward(obs2, params, max_tile_b=128))
    ref2 = _reference(obs2, params)
    assert v2.shape == (300,), v2.shape
    assert jnp.allclose(v2, ref2, atol=1e-4, rtol=1e-4)

    print("KERNEL_OK")
</pallas_src>

<mosaic_0001>
module attributes {stable_mosaic.version = 11 : i64} {
  func.func @_critic_kernel(%arg0: i32, %arg1: memref<128x16xf32, #tpu.memory_space<vmem>>, %arg2: memref<32x16xf32, #tpu.memory_space<vmem>>, %arg3: memref<32x1xf32, #tpu.memory_space<vmem>>, %arg4: memref<32x32xf32, #tpu.memory_space<vmem>>, %arg5: memref<32x1xf32, #tpu.memory_space<vmem>>, %arg6: memref<32x1xf32, #tpu.memory_space<vmem>>, %arg7: memref<1x1xf32, #tpu.memory_space<vmem>>, %arg8: memref<1x128xf32, #tpu.memory_space<vmem>>) attributes {dimension_semantics = [#tpu.dimension_semantics<parallel>], iteration_bounds = array<i64: 1>, scalar_prefetch = 0 : i64, scratch_operands = 0 : i64, tpu.core_type = #tpu.core_type<tc>, window_params = [{transform_indices = @transform_0, window_bounds = array<i64: 128, 16>}, {pipeline_mode = #tpu.pipeline_mode<synchronous>, transform_indices = @transform_1, window_bounds = array<i64: 32, 16>}, {pipeline_mode = #tpu.pipeline_mode<synchronous>, transform_indices = @transform_2, window_bounds = array<i64: 32, 1>}, {pipeline_mode = #tpu.pipeline_mode<synchronous>, transform_indices = @transform_3, window_bounds = array<i64: 32, 32>}, {pipeline_mode = #tpu.pipeline_mode<synchronous>, transform_indices = @transform_4, window_bounds = array<i64: 32, 1>}, {pipeline_mode = #tpu.pipeline_mode<synchronous>, transform_indices = @transform_5, window_bounds = array<i64: 32, 1>}, {pipeline_mode = #tpu.pipeline_mode<synchronous>, transform_indices = @transform_6, window_bounds = array<i64: 1, 1>}, {transform_indices = @transform_7, window_bounds = array<i64: 1, 128>}]} {
    %c0 = arith.constant 0 : index
    %c0_0 = arith.constant 0 : index
    %0 = vector.load %arg1[%c0, %c0_0] : memref<128x16xf32, #tpu.memory_space<vmem>>, vector<128x16xf32>
    %c0_1 = arith.constant 0 : index
    %c0_2 = arith.constant 0 : index
    %1 = vector.load %arg2[%c0_1, %c0_2] : memref<32x16xf32, #tpu.memory_space<vmem>>, vector<32x16xf32>
    %2 = tpu.transpose %0, [1, 0] : vector<128x16xf32> -> vector<16x128xf32>
    %cst = arith.constant dense<0.000000e+00> : vector<32x128xf32>
    %3 = tpu.matmul %1, %2, %cst {dimension_numbers = #tpu.dot_dimension_numbers<[1], [0], [0], [1], [0, 0, 1, 1], [], []>} : vector<32x16xf32>, vector<16x128xf32>, vector<32x128xf32> -> vector<32x128xf32>
    %c0_3 = arith.constant 0 : index
    %c0_4 = arith.constant 0 : index
    %4 = vector.load %arg3[%c0_3, %c0_4] : memref<32x1xf32, #tpu.memory_space<vmem>>, vector<32x1xf32>
    %5 = vector.broadcast %4 : vector<32x1xf32> to vector<32x128xf32>
    %6 = arith.addf %3, %5 : vector<32x128xf32>
    %7 = math.tanh %6 : vector<32x128xf32>
    %c0_5 = arith.constant 0 : index
    %c0_6 = arith.constant 0 : index
    %8 = vector.load %arg4[%c0_5, %c0_6] : memref<32x32xf32, #tpu.memory_space<vmem>>, vector<32x32xf32>
    %cst_7 = arith.constant dense<0.000000e+00> : vector<32x128xf32>
    %9 = tpu.matmul %8, %7, %cst_7 {dimension_numbers = #tpu.dot_dimension_numbers<[1], [0], [0], [1], [0, 0, 1, 1], [], []>} : vector<32x32xf32>, vector<32x128xf32>, vector<32x128xf32> -> vector<32x128xf32>
    %c0_8 = arith.constant 0 : index
    %c0_9 = arith.constant 0 : index
    %10 = vector.load %arg5[%c0_8, %c0_9] : memref<32x1xf32, #tpu.memory_space<vmem>>, vector<32x1xf32>
    %11 = vector.broadcast %10 : vector<32x1xf32> to vector<32x128xf32>
    %12 = arith.addf %9, %11 : vector<32x128xf32>
    %13 = math.tanh %12 : vector<32x128xf32>
    %c0_10 = arith.constant 0 : index
    %c0_11 = arith.constant 0 : index
    %14 = vector.load %arg6[%c0_10, %c0_11] : memref<32x1xf32, #tpu.memory_space<vmem>>, vector<32x1xf32>
    %15 = vector.broadcast %14 : vector<32x1xf32> to vector<32x128xf32>
    %16 = arith.mulf %13, %15 : vector<32x128xf32>
    %cst_12 = arith.constant dense<0.000000e+00> : vector<128xf32>
    %17 = vector.multi_reduction <add>, %16, %cst_12 [0] : vector<32x128xf32> to vector<128xf32>
    %18 = vector.shape_cast %17 : vector<128xf32> to vector<1x128xf32>
    %c0_13 = arith.constant 0 : index
    %c0_14 = arith.constant 0 : index
    %19 = vector.load %arg7[%c0_13, %c0_14] : memref<1x1xf32, #tpu.memory_space<vmem>>, vector<1x1xf32>
    %20 = vector.broadcast %19 : vector<1x1xf32> to vector<1x128xf32>
    %21 = arith.addf %18, %20 : vector<1x128xf32>
    %c0_15 = arith.constant 0 : index
    %c0_16 = arith.constant 0 : index
    %22 = vector.load %arg8[%c0_15, %c0_16] : memref<1x128xf32, #tpu.memory_space<vmem>>, vector<1x128xf32>
    tpu.vector_store %arg8[%c0_15, %c0_16], %21 {strides = array<i32>} : memref<1x128xf32, #tpu.memory_space<vmem>>, vector<1x128xf32>,
    return
  }
  func.func @transform_0(%arg0: i32) -> (i32, i32) {
    %c0_i32 = arith.constant 0 : i32
    %c0_i32_0 = arith.constant 0 : i32
    return %arg0, %c0_i32 : i32, i32
  }
  func.func @transform_1(%arg0: i32) -> (i32, i32) {
    %c0_i32 = arith.constant 0 : i32
    %c0_i32_0 = arith.constant 0 : i32
    %c0_i32_1 = arith.constant 0 : i32
    return %c0_i32, %c0_i32_0 : i32, i32
  }
  func.func @transform_2(%arg0: i32) -> (i32, i32) {
    %c0_i32 = arith.constant 0 : i32
    %c0_i32_0 = arith.constant 0 : i32
    %c0_i32_1 = arith.constant 0 : i32
    return %c0_i32, %c0_i32_0 : i32, i32
  }
  func.func @transform_3(%arg0: i32) -> (i32, i32) {
    %c0_i32 = arith.constant 0 : i32
    %c0_i32_0 = arith.constant 0 : i32
    %c0_i32_1 = arith.constant 0 : i32
    return %c0_i32, %c0_i32_0 : i32, i32
  }
  func.func @transform_4(%arg0: i32) -> (i32, i32) {
    %c0_i32 = arith.constant 0 : i32
    %c0_i32_0 = arith.constant 0 : i32
    %c0_i32_1 = arith.constant 0 : i32
    return %c0_i32, %c0_i32_0 : i32, i32
  }
  func.func @transform_5(%arg0: i32) -> (i32, i32) {
    %c0_i32 = arith.constant 0 : i32
    %c0_i32_0 = arith.constant 0 : i32
    %c0_i32_1 = arith.constant 0 : i32
    return %c0_i32, %c0_i32_0 : i32, i32
  }
  func.func @transform_6(%arg0: i32) -> (i32, i32) {
    %c0_i32 = arith.constant 0 : i32
    %c0_i32_0 = arith.constant 0 : i32
    %c0_i32_1 = arith.constant 0 : i32
    return %c0_i32, %c0_i32_0 : i32, i32
  }
  func.func @transform_7(%arg0: i32) -> (i32, i32) {
    %c0_i32 = arith.constant 0 : i32
    %c0_i32_0 = arith.constant 0 : i32
    return %c0_i32, %arg0 : i32, i32
  }
}

</mosaic_0001>

<llo_original>
// kernel: mlp_critic_forward.1
$region0: #{mlp_critic_forward.1}
  #allocation0 [shape = 'u32[]', space=smem, size = 0x4, offset = 0x4, fixed_abs, tag = 'smem constant byte address 0x4 - core index']
  #allocation1 [shape = 'u32[144,128]{1,0:T(1,128)}', space=vmem, size = 0x12000, scoped, tag = 'internal scratch']
  #allocation2 [shape = 'f32[1,1]{1,0:T(1,128)S(1)}', space=vmem, size = 0x200, scoped, tag = 'scoped memory for mlp_critic_forward.1']
  %s0 = inlined_call_operand.vmem [shape: f32[128,16], index: 0, kind: input, shape index: {}]
  %s1 = inlined_call_operand.vmem [shape: f32[32,16], index: 1, kind: input, shape index: {}]
  %s2 = inlined_call_operand.vmem [shape: f32[32,1], index: 2, kind: input, shape index: {}]
  %s3 = inlined_call_operand.vmem [shape: f32[32,32], index: 3, kind: input, shape index: {}]
  %s4 = inlined_call_operand.vmem [shape: f32[32,1], index: 4, kind: input, shape index: {}]
  %s5 = inlined_call_operand.vmem [shape: f32[32,1], index: 5, kind: input, shape index: {}]
  %s6 = inlined_call_operand.<no memory space> [shape: f32[1,1], index: 6, kind: input, shape index: {}]
  %s7 = inlined_call_operand.vmem [shape: f32[1,128], index: 7, kind: output, shape index: {}]
  %s8 = sld [smem:[#allocation0]]
  $region38: #{mlp_critic_forward.1} parent=0
    _
  %s10 = ssub.s32 1, %s8
  %s11 = scalar_select 0, %s10, %s8
  %v12 = vstv %s6
  %13 = vst [vmem:[#allocation2] sm:$0x1] %v12
  // Predicated region
  $region2: #{mlp_critic_forward.1} parent=0 // pred_check
    _
  $region3: #{mlp_critic_forward.1} parent=0 // pred_check_branch
    %15 = sbr.rel (0) target = $region5
  $region4: #{mlp_critic_forward.1} parent=0 // pred_region
    _
  $region5: #{mlp_critic_forward.1} parent=0 // pred_fallthru
    _
  // Predicated region
  $region6: #{mlp_critic_forward.1} parent=0 // pred_check
    _
  $region7: #{mlp_critic_forward.1} parent=0 // pred_check_branch
    %17 = sbr.rel (0) target = $region9
  $region8: #{mlp_critic_forward.1} parent=0 // pred_region
    _
  $region9: #{mlp_critic_forward.1} parent=0 // pred_fallthru
    _
  // Predicated region
  $region10: #{mlp_critic_forward.1} parent=0 // pred_check
    _
  $region11: #{mlp_critic_forward.1} parent=0 // pred_check_branch
    %19 = sbr.rel (0) target = $region13
  $region12: #{mlp_critic_forward.1} parent=0 // pred_region
    _
  $region13: #{mlp_critic_forward.1} parent=0 // pred_fallthru
    _
  // Predicated region
  $region14: #{mlp_critic_forward.1} parent=0 // pred_check
    _
  $region15: #{mlp_critic_forward.1} parent=0 // pred_check_branch
    %21 = sbr.rel (0) target = $region17
  $region16: #{mlp_critic_forward.1} parent=0 // pred_region
    _
  $region17: #{mlp_critic_forward.1} parent=0 // pred_fallthru
    _
  // Predicated region
  $region18: #{mlp_critic_forward.1} parent=0 // pred_check
    _
  $region19: #{mlp_critic_forward.1} parent=0 // pred_check_branch
    %23 = sbr.rel (0) target = $region21
  $region20: #{mlp_critic_forward.1} parent=0 // pred_region
    _
  $region21: #{mlp_critic_forward.1} parent=0 // pred_fallthru
    _
  // Predicated region
  $region22: #{mlp_critic_forward.1} parent=0 // pred_check
    _
  $region23: #{mlp_critic_forward.1} parent=0 // pred_check_branch
    %25 = sbr.rel (0) target = $region25
  $region24: #{mlp_critic_forward.1} parent=0 // pred_region
    _
  $region25: #{mlp_critic_forward.1} parent=0 // pred_fallthru
    _
  // Predicated region
  $region26: #{mlp_critic_forward.1} parent=0 // pred_check
    _
  $region27: #{mlp_critic_forward.1} parent=0 // pred_check_branch
    %27 = sbr.rel (0) target = $region29
  $region28: #{mlp_critic_forward.1} parent=0 // pred_region
    _
  $region29: #{mlp_critic_forward.1} parent=0 // pred_fallthru
    _
  %v28 = vld [vmem:[%s0] sm:$0xff]
  %v29 = vld [vmem:[%s0 + $0x8] sm:$0xff]
  %v30 = vld [vmem:[%s0 + $0x10] sm:$0xff]
  %v31 = vld [vmem:[%s0 + $0x18] sm:$0xff]
  %v32 = vld [vmem:[%s0 + $0x20] sm:$0xff]
  %v33 = vld [vmem:[%s0 + $0x28] sm:$0xff]
  %v34 = vld [vmem:[%s0 + $0x30] sm:$0xff]
  %v35 = vld [vmem:[%s0 + $0x38] sm:$0xff]
  %v36 = vld [vmem:[%s0 + $0x40] sm:$0xff]
  %v37 = vld [vmem:[%s0 + $0x48] sm:$0xff]
  %v38 = vld [vmem:[%s0 + $0x50] sm:$0xff]
  %v39 = vld [vmem:[%s0 + $0x58] sm:$0xff]
  %v40 = vld [vmem:[%s0 + $0x60] sm:$0xff]
  %v41 = vld [vmem:[%s0 + $0x68] sm:$0xff]
  %v42 = vld [vmem:[%s0 + $0x70] sm:$0xff]
  %v43 = vld [vmem:[%s0 + $0x78] sm:$0xff]
  %v44 = vld [vmem:[%s1] sm:$0xff]
  %v45 = vld [vmem:[%s1 + $0x8] sm:$0xff]
  %v46 = vld [vmem:[%s1 + $0x10] sm:$0xff]
  %v47 = vld [vmem:[%s1 + $0x18] sm:$0xff]
  %v48 = vld [vmem:[%s2] sm:$0xff]
  %v49 = vld [vmem:[%s2 + $0x8] sm:$0xff]
  %v50 = vld [vmem:[%s2 + $0x10] sm:$0xff]
  %v51 = vld [vmem:[%s2 + $0x18] sm:$0xff]
  %53 = vset.pattern.permute.xlu0 0
  %54 = vperm.xlu0 %53, %v48
  %v55 = vpop.permute.xlu0 %54
  %58 = vset.pattern.permute.xlu0 0
  %59 = vperm.xlu0 %58, %v49
  %v60 = vpop.permute.xlu0 %59
  %63 = vset.pattern.permute.xlu0 0
  %64 = vperm.xlu0 %63, %v50
  %v65 = vpop.permute.xlu0 %64
  %68 = vset.pattern.permute.xlu0 0
  %69 = vperm.xlu0 %68, %v51
  %v70 = vpop.permute.xlu0 %69
  %vm72 = vcmask 130048
  %v74 = vsel %vm72, %v44, 0
  %v77 = vsel %vm72, %v45, 0
  %v80 = vsel %vm72, %v46, 0
  %v83 = vsel %vm72, %v47, 0
  %v86 = vsel %vm72, %v28, 0
  %v89 = vsel %vm72, %v29, 0
  %v92 = vsel %vm72, %v30, 0
  %v95 = vsel %vm72, %v31, 0
  %v98 = vsel %vm72, %v32, 0
  %v101 = vsel %vm72, %v33, 0
  %v104 = vsel %vm72, %v34, 0
  %v107 = vsel %vm72, %v35, 0
  %v110 = vsel %vm72, %v36, 0
  %v113 = vsel %vm72, %v37, 0
  %v116 = vsel %vm72, %v38, 0
  %v119 = vsel %vm72, %v39, 0
  %v122 = vsel %vm72, %v40, 0
  %v125 = vsel %vm72, %v41, 0
  %v128 = vsel %vm72, %v42, 0
  %v131 = vsel %vm72, %v43, 0
  %133 = vmatprep.subr.mxu0 0.0
  %134 = vmatpush1.xpose.msra.mxu0 %v86
  %135 = vmatprep.subr.mxu0 0.0
  %136 = vmatpush1.xpose.msra.mxu0 %v89
  %137 = vmatprep.subr.mxu0 0.0
  %138 = vmatpush1.xpose.msra.mxu0 %v92
  %139 = vmatprep.subr.mxu0 0.0
  %140 = vmatpush1.xpose.msra.mxu0 %v95
  %141 = vmatprep.subr.mxu0 0.0
  %142 = vmatpush1.xpose.msra.mxu0 %v98
  %143 = vmatprep.subr.mxu0 0.0
  %144 = vmatpush1.xpose.msra.mxu0 %v101
  %145 = vmatprep.subr.mxu0 0.0
  %146 = vmatpush1.xpose.msra.mxu0 %v104
  %147 = vmatprep.subr.mxu0 0.0
  %148 = vmatpush1.xpose.msra.mxu0 %v107
  %149 = vmatprep.subr.mxu0 0.0
  %150 = vmatpush1.xpose.msra.mxu0 %v110
  %151 = vmatprep.subr.mxu0 0.0
  %152 = vmatpush1.xpose.msra.mxu0 %v113
  %153 = vmatprep.subr.mxu0 0.0
  %154 = vmatpush1.xpose.msra.mxu0 %v116
  %155 = vmatprep.subr.mxu0 0.0
  %156 = vmatpush1.xpose.msra.mxu0 %v119
  %157 = vmatprep.subr.mxu0 0.0
  %158 = vmatpush1.xpose.msra.mxu0 %v122
  %159 = vmatprep.subr.mxu0 0.0
  %160 = vmatpush1.xpose.msra.mxu0 %v125
  %161 = vmatprep.subr.mxu0 0.0
  %162 = vmatpush1.xpose.msra.mxu0 %v128
  %163 = vmatprep.subr.mxu0 0.0
  %164 = vmatpush1.xpose.msra.mxu0 %v131
  %165 = vmatprep.subr.mxu0 0.0
  %166 = vmatpush1.xpose.msra.mxu0 0.0
  %167 = vmatprep.subr.mxu0 0.0
  %168 = vmatpush1.xpose.msra.mxu0 0.0
  %169 = vmatprep.subr.mxu0 0.0
  %170 = vmatpush1.xpose.msra.mxu0 0.0
  %171 = vmatprep.subr.mxu0 0.0
  %172 = vmatpush1.xpose.msra.mxu0 0.0
  %173 = vmatprep.subr.mxu0 0.0
  %174 = vmatpush1.xpose.msra.mxu0 0.0
  %175 = vmatprep.subr.mxu0 0.0
  %176 = vmatpush1.xpose.msra.mxu0 0.0
  %177 = vmatprep.subr.mxu0 0.0
  %178 = vmatpush1.xpose.msra.mxu0 0.0
  %179 = vmatprep.subr.mxu0 0.0
  %180 = vmatpush1.xpose.msra.mxu0 0.0
  %181 = vmatprep.subr.mxu0 0.0
  %182 = vmatpush1.xpose.msra.mxu0 0.0
  %183 = vmatprep.subr.mxu0 0.0
  %184 = vmatpush1.xpose.msra.mxu0 0.0
  %185 = vmatprep.subr.mxu0 0.0
  %186 = vmatpush1.xpose.msra.mxu0 0.0
  %187 = vmatprep.subr.mxu0 0.0
  %188 = vmatpush1.xpose.msra.mxu0 0.0
  %189 = vmatprep.subr.mxu0 0.0
  %190 = vmatpush1.xpose.msra.mxu0 0.0
  %191 = vmatprep.subr.mxu0 0.0
  %192 = vmatpush1.xpose.msra.mxu0 0.0
  %193 = vmatprep.subr.mxu0 0.0
  %194 = vmatpush1.xpose.msra.mxu0 0.0
  %195 = vmatprep.subr.mxu0 0.0
  %196 = vmatpush1.xpose.msra.mxu0 0.0
  %197 = vmatprep.mubr.f32.mxu0 0.0
  %198 = vmatmul.mubr.f32.gmra.mrb[0].mxu0 %v74
  %v199 = vpop.f32.mrb[0].mxu0
  %v200 = vadd.f32 %v55, %v199
  %v201 = vpop.f32.mrb[0].mxu0
  %202 = vmatprep.mubr.f32.mxu0 0.0
  %203 = vmatmul.mubr.f32.gmra.mrb[0].mxu0 %v77
  %v204 = vpop.f32.mrb[0].mxu0
  %v205 = vadd.f32 %v60, %v204
  %v206 = vpop.f32.mrb[0].mxu0
  %207 = vmatprep.mubr.f32.mxu0 0.0
  %208 = vmatmul.mubr.f32.gmra.mrb[0].mxu0 %v80
  %v209 = vpop.f32.mrb[0].mxu0
  %v210 = vadd.f32 %v65, %v209
  %v211 = vpop.f32.mrb[0].mxu0
  %212 = vmatprep.mubr.f32.mxu0 0.0
  %213 = vmatmul.mubr.f32.gmra.mrb[0].mxu0 %v83
  %v214 = vpop.f32.mrb[0].mxu0
  %v215 = vadd.f32 %v70, %v214
  %v216 = vpop.f32.mrb[0].mxu0
  %217 = vdwg.mxu0
  %v218 = vtanh.pop %v200
  %v219 = vtanh.pop %v205
  %v220 = vtanh.pop %v210
  %v221 = vtanh.pop %v215
  %v222 = vld [vmem:[%s3] sm:$0xff]
  %v223 = vld [vmem:[%s3 + $0x8] sm:$0xff]
  %v224 = vld [vmem:[%s3 + $0x10] sm:$0xff]
  %v225 = vld [vmem:[%s3 + $0x18] sm:$0xff]
  %v226 = vld [vmem:[%s4] sm:$0xff]
  %v227 = vld [vmem:[%s4 + $0x8] sm:$0xff]
  %v228 = vld [vmem:[%s4 + $0x10] sm:$0xff]
  %v229 = vld [vmem:[%s4 + $0x18] sm:$0xff]
  %231 = vset.pattern.permute.xlu0 0
  %232 = vperm.xlu0 %231, %v226
  %v233 = vpop.permute.xlu0 %232
  %236 = vset.pattern.permute.xlu0 0
  %237 = vperm.xlu0 %236, %v227
  %v238 = vpop.permute.xlu0 %237
  %241 = vset.pattern.permute.xlu0 0
  %242 = vperm.xlu0 %241, %v228
  %v243 = vpop.permute.xlu0 %242
  %246 = vset.pattern.permute.xlu0 0
  %247 = vperm.xlu0 %246, %v229
  %v248 = vpop.permute.xlu0 %247
  %vm250 = vcmask 261120
  %v252 = vsel %vm250, %v222, 0
  %v255 = vsel %vm250, %v223, 0
  %v258 = vsel %vm250, %v224, 0
  %v261 = vsel %vm250, %v225, 0
  %263 = vmatprep.subr.mxu0 0.0
  %264 = vmatpush1.msra.mxu0 %v218
  %265 = vmatprep.subr.mxu0 0.0
  %266 = vmatpush1.msra.mxu0 %v219
  %267 = vmatprep.subr.mxu0 0.0
  %268 = vmatpush1.msra.mxu0 %v220
  %269 = vmatprep.subr.mxu0 0.0
  %270 = vmatpush1.msra.mxu0 %v221
  %271 = vmatprep.subr.mxu0 0.0
  %272 = vmatpush1.msra.mxu0 0.0
  %273 = vmatprep.subr.mxu0 0.0
  %274 = vmatpush1.msra.mxu0 0.0
  %275 = vmatprep.subr.mxu0 0.0
  %276 = vmatpush1.msra.mxu0 0.0
  %277 = vmatprep.subr.mxu0 0.0
  %278 = vmatpush1.msra.mxu0 0.0
  %279 = vmatprep.subr.mxu0 0.0
  %280 = vmatpush1.msra.mxu0 0.0
  %281 = vmatprep.subr.mxu0 0.0
  %282 = vmatpush1.msra.mxu0 0.0
  %283 = vmatprep.subr.mxu0 0.0
  %284 = vmatpush1.msra.mxu0 0.0
  %285 = vmatprep.subr.mxu0 0.0
  %286 = vmatpush1.msra.mxu0 0.0
  %287 = vmatprep.subr.mxu0 0.0
  %288 = vmatpush1.msra.mxu0 0.0
  %289 = vmatprep.subr.mxu0 0.0
  %290 = vmatpush1.msra.mxu0 0.0
  %291 = vmatprep.subr.mxu0 0.0
  %292 = vmatpush1.msra.mxu0 0.0
  %293 = vmatprep.subr.mxu0 0.0
  %294 = vmatpush1.msra.mxu0 0.0
  %295 = vmatprep.subr.mxu0 0.0
  %296 = vmatpush1.msra.mxu0 0.0
  %297 = vmatprep.subr.mxu0 0.0
  %298 = vmatpush1.msra.mxu0 0.0
  %299 = vmatprep.subr.mxu0 0.0
  %300 = vmatpush1.msra.mxu0 0.0
  %301 = vmatprep.subr.mxu0 0.0
  %302 = vmatpush1.msra.mxu0 0.0
  %303 = vmatprep.subr.mxu0 0.0
  %304 = vmatpush1.msra.mxu0 0.0
  %305 = vmatprep.subr.mxu0 0.0
  %306 = vmatpush1.msra.mxu0 0.0
  %307 = vmatprep.subr.mxu0 0.0
  %308 = vmatpush1.msra.mxu0 0.0
  %309 = vmatprep.subr.mxu0 0.0
  %310 = vmatpush1.msra.mxu0 0.0
  %311 = vmatprep.subr.mxu0 0.0
  %312 = vmatpush1.msra.mxu0 0.0
  %313 = vmatprep.subr.mxu0 0.0
  %314 = vmatpush1.msra.mxu0 0.0
  %315 = vmatprep.subr.mxu0 0.0
  %316 = vmatpush1.msra.mxu0 0.0
  %317 = vmatprep.subr.mxu0 0.0
  %318 = vmatpush1.msra.mxu0 0.0
  %319 = vmatprep.subr.mxu0 0.0
  %320 = vmatpush1.msra.mxu0 0.0
  %321 = vmatprep.subr.mxu0 0.0
  %322 = vmatpush1.msra.mxu0 0.0
  %323 = vmatprep.subr.mxu0 0.0
  %324 = vmatpush1.msra.mxu0 0.0
  %325 = vmatprep.subr.mxu0 0.0
  %326 = vmatpush1.msra.mxu0 0.0
  %327 = vmatprep.mubr.f32.mxu0 0.0
  %328 = vmatmul.mubr.f32.gmra.mrb[0].mxu0 %v252
  %v329 = vpop.f32.mrb[0].mxu0
  %v330 = vadd.f32 %v233, %v329
  %v331 = vpop.f32.mrb[0].mxu0
  %332 = vmatprep.mubr.f32.mxu0 0.0
  %333 = vmatmul.mubr.f32.gmra.mrb[0].mxu0 %v255
  %v334 = vpop.f32.mrb[0].mxu0
  %v335 = vadd.f32 %v238, %v334
  %v336 = vpop.f32.mrb[0].mxu0
  %337 = vmatprep.mubr.f32.mxu0 0.0
  %338 = vmatmul.mubr.f32.gmra.mrb[0].mxu0 %v258
  %v339 = vpop.f32.mrb[0].mxu0
  %v340 = vadd.f32 %v243, %v339
  %v341 = vpop.f32.mrb[0].mxu0
  %342 = vmatprep.mubr.f32.mxu0 0.0
  %343 = vmatmul.mubr.f32.gmra.mrb[0].mxu0 %v261
  %v344 = vpop.f32.mrb[0].mxu0
  %v345 = vadd.f32 %v248, %v344
  %v346 = vpop.f32.mrb[0].mxu0
  %347 = vdwg.mxu0
  %v348 = vtanh.pop %v330
  %v349 = vtanh.pop %v335
  %v350 = vtanh.pop %v340
  %v351 = vtanh.pop %v345
  %v352 = vld [vmem:[%s5] sm:$0xff]
  %v353 = vld [vmem:[%s5 + $0x8] sm:$0xff]
  %v354 = vld [vmem:[%s5 + $0x10] sm:$0xff]
  %v355 = vld [vmem:[%s5 + $0x18] sm:$0xff]
  %357 = vset.pattern.permute.xlu0 0
  %358 = vperm.xlu0 %357, %v352
  %v359 = vpop.permute.xlu0 %358
  %362 = vset.pattern.permute.xlu0 0
  %363 = vperm.xlu0 %362, %v353
  %v364 = vpop.permute.xlu0 %363
  %367 = vset.pattern.permute.xlu0 0
  %368 = vperm.xlu0 %367, %v354
  %v369 = vpop.permute.xlu0 %368
  %372 = vset.pattern.permute.xlu0 0
  %373 = vperm.xlu0 %372, %v355
  %v374 = vpop.permute.xlu0 %373
  %v376 = vmul.f32 %v348, %v359
  %v377 = vmul.f32 %v349, %v364
  %v378 = vmul.f32 %v350, %v369
  %v379 = vmul.f32 %v351, %v374
  %v380 = vadd.f32 %v376, %v377
  %v381 = vadd.f32 %v380, %v378
  %v382 = vadd.f32 %v381, %v379
  %v383 = vrot.slane %v382, 4
  %v384 = vadd.f32 %v382, %v383
  %v385 = vrot.slane %v384, 2
  %v386 = vadd.f32 %v384, %v385
  %v387 = vrot.slane %v386, 1
  %v388 = vadd.f32 %v386, %v387
  %v389 = vld [vmem:[#allocation2] sm:$0x1]
  %391 = vset.pattern.permute.xlu0 0
  %392 = vperm.xlu0 %391, %v389
  %v393 = vpop.permute.xlu0 %392
  %v395 = vlaneseq
  %v396 = vshrl.u32 %v395, 7
  %v397 = vsub.s32 0, %v396
  %v398 = vrot.slane %v393, %v397
  %v399 = vadd.f32 %v388, %v398
  %400 = vst [vmem:[%s7] sm:$0x1] %v399
  // Predicated region
  $region30: #{mlp_critic_forward.1} parent=0 // pred_check
    _
  $region31: #{mlp_critic_forward.1} parent=0 // pred_check_branch
    %402 = sbr.rel (0) target = $region33
  $region32: #{mlp_critic_forward.1} parent=0 // pred_region
    _
  $region33: #{mlp_critic_forward.1} parent=0 // pred_fallthru
    _
  // Predicated region
  $region34: #{mlp_critic_forward.1} parent=0 // pred_check
    _
  $region35: #{mlp_critic_forward.1} parent=0 // pred_check_branch
    %404 = sbr.rel (0) target = $region37
  $region36: #{mlp_critic_forward.1} parent=0 // pred_region
    _
  $region37: #{mlp_critic_forward.1} parent=0 // pred_fallthru
    _

</llo_original>
